<compile_context>
chip_gen: v6e
topology: v6e:2x2x1
jax: 0.10.0
libtpu: 0.0.40
codegen_flags: <defaults>
</compile_context>

<pallas_src>
import functools

import jax
import jax.numpy as jnp
from jax import lax
from jax.experimental import pallas as pl
from jax.experimental.pallas import tpu as pltpu


def _density_block_kernel(t_ref, x_ref, w_ref, b_ref, o_ref, *, num_grid):
    tile_n = x_ref.shape[0]
    outd = w_ref.shape[1]

    # ---- matmul (bf16 inputs, f32 accumulation on the MXU) + bias ----
    logits = jnp.dot(x_ref[...], w_ref[...], preferred_element_type=jnp.float32)
    logits = logits + b_ref[...]                              # (tile_n, outd) f32

    # ---- numerically stable softmax numerator (normalization folded into reciprocal) ----
    m = jnp.max(logits, axis=1, keepdims=True)                # (tile_n, 1)
    e = jnp.exp(logits - m)                                   # (tile_n, outd) f32

    # ---- comp_grid(t, num_grid): per-row lower/upper grid index + interpolation weight ----
    t = t_ref[...]                                            # (tile_n, 1) f32
    y = t * jnp.float32(num_grid)
    U_f = jnp.ceil(y)
    inter = 1.0 - (U_f - y)                                   # (tile_n, 1)
    L_f = U_f - 1.0
    L_f = jnp.where(L_f < 0.0, L_f + 1.0, L_f)                # L += (L < 0)
    L = jnp.clip(L_f, 0.0, float(num_grid)).astype(jnp.int32)  # (tile_n, 1)
    U = jnp.clip(U_f, 0.0, float(num_grid)).astype(jnp.int32)  # (tile_n, 1)

    # ---- fused interpolation weights: (1-inter) at column L, inter at column U ----
    cols = lax.broadcasted_iota(jnp.int32, (tile_n, outd), 1)
    wcol = jnp.where(cols == L, 1.0 - inter, 0.0) + jnp.where(cols == U, inter, 0.0)

    # ---- lane-dense row reductions on the (otherwise idle) MXU ----
    #   num[0, i] = sum_j e[i, j] * wcol[i, j]      den[0, i] = sum_j e[i, j]
    ones_row = jnp.ones((1, outd), jnp.float32)
    dn = (((1,), (1,)), ((), ()))                             # contract over outd on both sides
    num_row = lax.dot_general(ones_row, e * wcol, dn,
                              preferred_element_type=jnp.float32)   # (1, tile_n)
    den_row = lax.dot_general(ones_row, e, dn,
                              preferred_element_type=jnp.float32)   # (1, tile_n)

    out_row = num_row * pl.reciprocal(den_row, approx=True)          # (1, tile_n)
    o_ref[...] = out_row.reshape(o_ref.shape)                        # (1, 1, tile_n)


def density_block_forward(t, x, weight, bias, num_grid, *, max_tile_n=2048):
    """Pallas implementation of Density_Block.forward(t, x). Returns shape (N,)."""
    N, ind = x.shape
    outd = num_grid + 1
    assert weight.shape == (ind, outd)
    assert bias.shape == (outd,)

    # Biggest tile that comfortably fits scoped VMEM on v5e/v6e/v7x for moderate `ind`;
    # if N fits in one tile, a single full-dim block is used (always layout-legal).
    tile_n = N if N <= max_tile_n else max_tile_n
    num_tiles = pl.cdiv(N, tile_n)

    # bf16 matmul inputs halve the dominant HBM read of x; everything else stays f32.
    xf = x.astype(jnp.bfloat16)
    wf = weight.astype(jnp.bfloat16)
    b2 = bias.reshape(1, outd).astype(jnp.float32)
    t2 = t.reshape(N, 1).astype(jnp.float32)   # keep t in f32 (exact grid boundaries)

    kernel = functools.partial(_density_block_kernel, num_grid=num_grid)

    cost = pl.CostEstimate(
        flops=2 * N * outd * (ind + 2),
        transcendentals=N * outd + N,
        bytes_accessed=N * ind * 2 + ind * outd * 2 + outd * 4 + N * 4 + N * 4,
    )

    out = pl.pallas_call(
        kernel,
        out_shape=jax.ShapeDtypeStruct((num_tiles, 1, tile_n), jnp.float32),
        grid=(num_tiles,),
        in_specs=[
            pl.BlockSpec((tile_n, 1), lambda i: (i, 0)),       # t     (tiled over N)
            pl.BlockSpec((tile_n, ind), lambda i: (i, 0)),     # x     (tiled over N)
            pl.BlockSpec((ind, outd), lambda i: (0, 0)),       # weight (VMEM-resident)
            pl.BlockSpec((1, outd), lambda i: (0, 0)),         # bias   (VMEM-resident)
        ],
        out_specs=pl.BlockSpec((1, 1, tile_n), lambda i: (i, 0, 0)),  # lane-dense output
        compiler_params=pltpu.CompilerParams(
            dimension_semantics=("parallel",),    # shard rows across both TCs on v7x
            vmem_limit_bytes=32 * 1024 * 1024,
        ),
        cost_estimate=cost,
    )(t2, xf, wf, b2)

    return out.reshape(num_tiles * tile_n)[:N]


def _reference_forward(t, x, weight, bias, num_grid, *, matmul_dtype=jnp.float32):
    """Plain-JAX reference mirroring the PyTorch module (optionally bf16 matmul inputs)."""
    logits = jnp.dot(x.astype(matmul_dtype), weight.astype(matmul_dtype),
                     preferred_element_type=jnp.float32) + bias.astype(jnp.float32)
    p = jax.nn.softmax(logits, axis=1)
    y = t * num_grid
    U = jnp.ceil(y)
    inter = 1.0 - (U - y)
    L = U - 1.0
    L = jnp.where(L < 0.0, L + 1.0, L)
    Li = L.astype(jnp.int32)
    Ui = U.astype(jnp.int32)
    rows = jnp.arange(x.shape[0])
    L_out = p[rows, Li]
    U_out = p[rows, Ui]
    return L_out + (U_out - L_out) * inter


if __name__ == "__main__":
    # Small, module-consistent shapes: batch N=8, input dim ind=32, num_grid=16 -> outd=17.
    N, ind, num_grid = 8, 32, 16
    outd = num_grid + 1

    key = jax.random.PRNGKey(0)
    k_w, k_b, k_x, k_t = jax.random.split(key, 4)

    # Deterministic "torch.rand"-style init: uniform [0, 1).
    weight = jax.random.uniform(k_w, (ind, outd), dtype=jnp.float32)
    bias = jax.random.uniform(k_b, (outd,), dtype=jnp.float32)

    x = jax.random.uniform(k_x, (N, ind), dtype=jnp.float32)
    t = jax.random.uniform(k_t, (N,), dtype=jnp.float32)  # bounded in [0, 1]

    out = density_block_forward(t, x, weight, bias, num_grid)
    out = jax.block_until_ready(out)
    assert out.shape == (N,)

    # Tight check against a precision-matched (bf16 matmul inputs, f32 accum) reference;
    # remaining delta comes from the EUP approx reciprocal (~1e-4 relative).
    ref_bf16 = _reference_forward(t, x, weight, bias, num_grid, matmul_dtype=jnp.bfloat16)
    assert jnp.allclose(out, ref_bf16, atol=2e-3, rtol=2e-3), (out, ref_bf16)

    # Loose sanity check against the pure-f32 PyTorch-equivalent reference
    # (difference is only the bf16 quantization of the matmul inputs).
    ref_f32 = _reference_forward(t, x, weight, bias, num_grid, matmul_dtype=jnp.float32)
    assert jnp.allclose(out, ref_f32, atol=2e-2), (out, ref_f32)

    print("KERNEL_OK")
</pallas_src>

<mosaic_0001>
module attributes {stable_mosaic.version = 11 : i64} {
  func.func @_density_block_kernel(%arg0: i32, %arg1: memref<8x1xf32, #tpu.memory_space<vmem>>, %arg2: memref<8x32xbf16, #tpu.memory_space<vmem>>, %arg3: memref<32x17xbf16, #tpu.memory_space<vmem>>, %arg4: memref<1x17xf32, #tpu.memory_space<vmem>>, %arg5: memref<1x1x8xf32, #tpu.memory_space<vmem>>) attributes {dimension_semantics = [#tpu.dimension_semantics<parallel>], iteration_bounds = array<i64: 1>, scalar_prefetch = 0 : i64, scratch_operands = 0 : i64, tpu.core_type = #tpu.core_type<tc>, window_params = [{transform_indices = @transform_0, window_bounds = array<i64: 8, 1>}, {transform_indices = @transform_1, window_bounds = array<i64: 8, 32>}, {pipeline_mode = #tpu.pipeline_mode<synchronous>, transform_indices = @transform_2, window_bounds = array<i64: 32, 17>}, {pipeline_mode = #tpu.pipeline_mode<synchronous>, transform_indices = @transform_3, window_bounds = array<i64: 1, 17>}, {transform_indices = @transform_4, window_bounds = array<i64: 1, 1, 8>}]} {
    %c0 = arith.constant 0 : index
    %c0_0 = arith.constant 0 : index
    %0 = vector.load %arg2[%c0, %c0_0] : memref<8x32xbf16, #tpu.memory_space<vmem>>, vector<8x32xbf16>
    %c0_1 = arith.constant 0 : index
    %c0_2 = arith.constant 0 : index
    %1 = vector.load %arg3[%c0_1, %c0_2] : memref<32x17xbf16, #tpu.memory_space<vmem>>, vector<32x17xbf16>
    %cst = arith.constant dense<0.000000e+00> : vector<8x17xf32>
    %2 = tpu.matmul %0, %1, %cst {dimension_numbers = #tpu.dot_dimension_numbers<[1], [0], [0], [1], [0, 0, 1, 1], [], []>} : vector<8x32xbf16>, vector<32x17xbf16>, vector<8x17xf32> -> vector<8x17xf32>
    %c0_3 = arith.constant 0 : index
    %c0_4 = arith.constant 0 : index
    %3 = vector.load %arg4[%c0_3, %c0_4] : memref<1x17xf32, #tpu.memory_space<vmem>>, vector<1x17xf32>
    %4 = vector.broadcast %3 : vector<1x17xf32> to vector<8x17xf32>
    %5 = arith.addf %2, %4 : vector<8x17xf32>
    %cst_5 = arith.constant dense<0xFF800000> : vector<8xf32>
    %6 = vector.multi_reduction <maximumf>, %5, %cst_5 [1] : vector<8x17xf32> to vector<8xf32>
    %7 = vector.shape_cast %6 : vector<8xf32> to vector<8x1xf32>
    %8 = vector.broadcast %7 : vector<8x1xf32> to vector<8x17xf32>
    %9 = arith.subf %5, %8 : vector<8x17xf32>
    %10 = math.exp %9 : vector<8x17xf32>
    %c0_6 = arith.constant 0 : index
    %c0_7 = arith.constant 0 : index
    %11 = vector.load %arg1[%c0_6, %c0_7] : memref<8x1xf32, #tpu.memory_space<vmem>>, vector<8x1xf32>
    %cst_8 = arith.constant 1.600000e+01 : f32
    %12 = vector.broadcast %cst_8 : f32 to vector<8x1xf32>
    %13 = arith.mulf %11, %12 : vector<8x1xf32>
    %14 = math.ceil %13 : vector<8x1xf32>
    %15 = arith.subf %14, %13 : vector<8x1xf32>
    %cst_9 = arith.constant 1.000000e+00 : f32
    %16 = vector.broadcast %cst_9 : f32 to vector<8x1xf32>
    %17 = arith.subf %16, %15 : vector<8x1xf32>
    %cst_10 = arith.constant 1.000000e+00 : f32
    %18 = vector.broadcast %cst_10 : f32 to vector<8x1xf32>
    %19 = arith.subf %14, %18 : vector<8x1xf32>
    %cst_11 = arith.constant 0.000000e+00 : f32
    %20 = vector.broadcast %cst_11 : f32 to vector<8x1xf32>
    %21 = arith.cmpf olt, %19, %20 : vector<8x1xf32>
    %cst_12 = arith.constant 1.000000e+00 : f32
    %22 = vector.broadcast %cst_12 : f32 to vector<8x1xf32>
    %23 = arith.addf %19, %22 : vector<8x1xf32>
    %24 = arith.select %21, %23, %19 : vector<8x1xi1>, vector<8x1xf32>
    %cst_13 = arith.constant 0.000000e+00 : f32
    %cst_14 = arith.constant 1.600000e+01 : f32
    %25 = vector.broadcast %cst_13 : f32 to vector<8x1xf32>
    %26 = arith.maximumf %25, %24 : vector<8x1xf32>
    %27 = vector.broadcast %cst_14 : f32 to vector<8x1xf32>
    %28 = arith.minimumf %27, %26 : vector<8x1xf32>
    %29 = arith.fptosi %28 : vector<8x1xf32> to vector<8x1xi32>
    %cst_15 = arith.constant 0.000000e+00 : f32
    %cst_16 = arith.constant 1.600000e+01 : f32
    %30 = vector.broadcast %cst_15 : f32 to vector<8x1xf32>
    %31 = arith.maximumf %30, %14 : vector<8x1xf32>
    %32 = vector.broadcast %cst_16 : f32 to vector<8x1xf32>
    %33 = arith.minimumf %32, %31 : vector<8x1xf32>
    %34 = arith.fptosi %33 : vector<8x1xf32> to vector<8x1xi32>
    %35 = tpu.iota {dimensions = array<i32: 1>} : vector<8x17xi32>
    %36 = vector.broadcast %29 : vector<8x1xi32> to vector<8x17xi32>
    %37 = arith.cmpi eq, %35, %36 : vector<8x17xi32>
    %cst_17 = arith.constant 1.000000e+00 : f32
    %38 = vector.broadcast %cst_17 : f32 to vector<8x1xf32>
    %39 = arith.subf %38, %17 : vector<8x1xf32>
    %cst_18 = arith.constant 0.000000e+00 : f32
    %40 = vector.shape_cast %39 : vector<8x1xf32> to vector<8x1xf32>
    %41 = vector.broadcast %40 : vector<8x1xf32> to vector<8x17xf32>
    %42 = vector.broadcast %cst_18 : f32 to vector<8x17xf32>
    %43 = arith.select %37, %41, %42 : vector<8x17xi1>, vector<8x17xf32>
    %44 = vector.broadcast %34 : vector<8x1xi32> to vector<8x17xi32>
    %45 = arith.cmpi eq, %35, %44 : vector<8x17xi32>
    %cst_19 = arith.constant 0.000000e+00 : f32
    %46 = vector.shape_cast %17 : vector<8x1xf32> to vector<8x1xf32>
    %47 = vector.broadcast %46 : vector<8x1xf32> to vector<8x17xf32>
    %48 = vector.broadcast %cst_19 : f32 to vector<8x17xf32>
    %49 = arith.select %45, %47, %48 : vector<8x17xi1>, vector<8x17xf32>
    %50 = arith.addf %43, %49 : vector<8x17xf32>
    %cst_20 = arith.constant 1.000000e+00 : f32
    %51 = vector.broadcast %cst_20 : f32 to vector<1x17xf32>
    %52 = arith.mulf %10, %50 : vector<8x17xf32>
    %cst_21 = arith.constant dense<0.000000e+00> : vector<1x8xf32>
    %53 = tpu.matmul %51, %52, %cst_21 {dimension_numbers = #tpu.dot_dimension_numbers<[1], [1], [0], [0], [0, 0, 1, 0], [], []>} : vector<1x17xf32>, vector<8x17xf32>, vector<1x8xf32> -> vector<1x8xf32>
    %cst_22 = arith.constant dense<0.000000e+00> : vector<1x8xf32>
    %54 = tpu.matmul %51, %10, %cst_22 {dimension_numbers = #tpu.dot_dimension_numbers<[1], [1], [0], [0], [0, 0, 1, 0], [], []>} : vector<1x17xf32>, vector<8x17xf32>, vector<1x8xf32> -> vector<1x8xf32>
    %55 = tpu.reciprocal %54 {approx = true} : vector<1x8xf32> -> vector<1x8xf32>
    %56 = arith.mulf %53, %55 : vector<1x8xf32>
    %57 = vector.shape_cast %56 : vector<1x8xf32> to vector<1x1x8xf32>
    %c0_23 = arith.constant 0 : index
    %c0_24 = arith.constant 0 : index
    %c0_25 = arith.constant 0 : index
    %58 = vector.load %arg5[%c0_23, %c0_24, %c0_25] : memref<1x1x8xf32, #tpu.memory_space<vmem>>, vector<1x1x8xf32>
    tpu.vector_store %arg5[%c0_23, %c0_24, %c0_25], %57 {strides = array<i32>} : memref<1x1x8xf32, #tpu.memory_space<vmem>>, vector<1x1x8xf32>,
    return
  }
  func.func @transform_0(%arg0: i32) -> (i32, i32) {
    %c0_i32 = arith.constant 0 : i32
    %c0_i32_0 = arith.constant 0 : i32
    return %arg0, %c0_i32 : i32, i32
  }
  func.func @transform_1(%arg0: i32) -> (i32, i32) {
    %c0_i32 = arith.constant 0 : i32
    %c0_i32_0 = arith.constant 0 : i32
    return %arg0, %c0_i32 : i32, i32
  }
  func.func @transform_2(%arg0: i32) -> (i32, i32) {
    %c0_i32 = arith.constant 0 : i32
    %c0_i32_0 = arith.constant 0 : i32
    %c0_i32_1 = arith.constant 0 : i32
    return %c0_i32, %c0_i32_0 : i32, i32
  }
  func.func @transform_3(%arg0: i32) -> (i32, i32) {
    %c0_i32 = arith.constant 0 : i32
    %c0_i32_0 = arith.constant 0 : i32
    %c0_i32_1 = arith.constant 0 : i32
    return %c0_i32, %c0_i32_0 : i32, i32
  }
  func.func @transform_4(%arg0: i32) -> (i32, i32, i32) {
    %c0_i32 = arith.constant 0 : i32
    %c0_i32_0 = arith.constant 0 : i32
    %c0_i32_1 = arith.constant 0 : i32
    return %arg0, %c0_i32, %c0_i32_0 : i32, i32, i32
  }
}

</mosaic_0001>

<llo_original>
// kernel: tpu_custom_call.1
$region0: #{tpu_custom_call.1}
  #allocation0 [shape = 'u32[]', space=smem, size = 0x4, offset = 0x4, fixed_abs, tag = 'smem constant byte address 0x4 - core index']
  #allocation1 [shape = 'u32[144,128]{1,0:T(1,128)}', space=vmem, size = 0x12000, scoped, tag = 'internal scratch']
  %s0 = inlined_call_operand.vmem [shape: f32[8,1], index: 0, kind: input, shape index: {}]
  %s1 = inlined_call_operand.vmem [shape: bf16[8,32], index: 1, kind: input, shape index: {}]
  %s2 = inlined_call_operand.vmem [shape: bf16[32,17], index: 2, kind: input, shape index: {}]
  %s3 = inlined_call_operand.vmem [shape: f32[1,17], index: 3, kind: input, shape index: {}]
  %s4 = inlined_call_operand.hbm [shape: f32[1,1,8], index: 4, kind: output, shape index: {}]
  %s5 = sld [smem:[#allocation0]]
  $region26: #{tpu_custom_call.1} parent=0
    _
  %s7 = ssub.s32 1, %s5
  %s8 = scalar_select 0, %s7, %s5
  $region1: #{tpu_custom_call.1} parent=0
    #allocation2 [shape = 'u8[512]{0}', space=vmem, size = 0x400, scoped, tag = 'output window, operand 0, single buffered']
    #allocation3 [shape = 's32[1]{0}', space=sflag, size = 0x4, scoped, tag = 'scoped memory for tpu_custom_call.1']
    %9 = vsyncpa [#allocation3], 0
    // Predicated region
    $region2: #{tpu_custom_call.1} parent=1 // pred_check
      _
    $region3: #{tpu_custom_call.1} parent=1 // pred_check_branch
      %11 = sbr.rel (0) target = $region5
    $region4: #{tpu_custom_call.1} parent=1 // pred_region
      _
    $region5: #{tpu_custom_call.1} parent=1 // pred_fallthru
      _
    // Predicated region
    $region6: #{tpu_custom_call.1} parent=1 // pred_check
      _
    $region7: #{tpu_custom_call.1} parent=1 // pred_check_branch
      %13 = sbr.rel (0) target = $region9
    $region8: #{tpu_custom_call.1} parent=1 // pred_region
      _
    $region9: #{tpu_custom_call.1} parent=1 // pred_fallthru
      _
    // Predicated region
    $region10: #{tpu_custom_call.1} parent=1 // pred_check
      _
    $region11: #{tpu_custom_call.1} parent=1 // pred_check_branch
      %15 = sbr.rel (0) target = $region13
    $region12: #{tpu_custom_call.1} parent=1 // pred_region
      _
    $region13: #{tpu_custom_call.1} parent=1 // pred_fallthru
      _
    // Predicated region
    $region14: #{tpu_custom_call.1} parent=1 // pred_check
      _
    $region15: #{tpu_custom_call.1} parent=1 // pred_check_branch
      %17 = sbr.rel (0) target = $region17
    $region16: #{tpu_custom_call.1} parent=1 // pred_region
      _
    $region17: #{tpu_custom_call.1} parent=1 // pred_fallthru
      _
    %v19 = vld [vmem:[%s1] sm:$0xf]
    %v20 = vld [vmem:[%s2] sm:$0xf]
    %v21 = vld [vmem:[%s2 + $0x4] sm:$0xf]
    %v22 = vld [vmem:[%s2 + $0x8] sm:$0xf]
    %v23 = vld [vmem:[%s2 + $0xc] sm:$0xf]
    %v24 = vld [vmem:[%s3] sm:$0x1]
    %v26 = vlaneseq
    %v27 = vshrl.u32 %v26, 7
    %v28 = vsub.s32 0, %v27
    %v29 = vrot.slane %v24, %v28
    %v35 = vunpack.c.l.b16 %v20
    %v36 = vunpack.c.l.b16 %v21
    %v37 = vunpack.c.l.b16 %v22
    %v38 = vunpack.c.l.b16 %v23
    %v39 = vpack.c.b16 %v36, %v35
    %v40 = vpack.c.b16 %v38, %v37
    %vm43 = vcmask 261120
    %v45 = vsel %vm43, %v19, 0
    %47 = vmatprep.subr.bf16.mxu0 0
    %48 = vmatpush1.bf16.msra.mxu0 0
    %49 = vmatprep.subr.bf16.mxu0 0
    %50 = vmatpush1.bf16.msra.mxu0 0
    %51 = vmatprep.subr.bf16.mxu0 0
    %52 = vmatpush1.bf16.msra.mxu0 0
    %53 = vmatprep.subr.bf16.mxu0 0
    %54 = vmatpush1.bf16.msra.mxu0 0
    %55 = vmatprep.subr.bf16.mxu0 0
    %56 = vmatpush1.bf16.msra.mxu0 0
    %57 = vmatprep.subr.bf16.mxu0 0
    %58 = vmatpush1.bf16.msra.mxu0 0
    %59 = vmatprep.subr.bf16.mxu0 0
    %60 = vmatpush1.bf16.msra.mxu0 %v40
    %61 = vmatprep.subr.bf16.mxu0 0
    %62 = vmatpush1.bf16.msra.mxu0 %v39
    %63 = vmatprep.subr.bf16.mxu0 0
    %64 = vmatpush2.bf16.msra.mxu0 0
    %65 = vmatprep.subr.bf16.mxu0 0
    %66 = vmatpush2.bf16.msra.mxu0 0
    %67 = vmatprep.subr.bf16.mxu0 0
    %68 = vmatpush2.bf16.msra.mxu0 0
    %69 = vmatprep.subr.bf16.mxu0 0
    %70 = vmatpush2.bf16.msra.mxu0 0
    %71 = vmatprep.subr.bf16.mxu0 0
    %72 = vmatpush2.bf16.msra.mxu0 0
    %73 = vmatprep.subr.bf16.mxu0 0
    %74 = vmatpush2.bf16.msra.mxu0 0
    %75 = vmatprep.subr.bf16.mxu0 0
    %76 = vmatpush2.bf16.msra.mxu0 0
    %77 = vmatprep.subr.bf16.mxu0 0
    %78 = vmatpush2.bf16.msra.mxu0 0
    %79 = vmatprep.mubr.bf16.mxu0 0
    %80 = vmatmul.mubr.bf16.gmra.mxu0 %v45
    %v81 = vpop.f32.mrf.mxu0
    %v82 = vadd.f32 %v29, %v81
    %v83 = vpop.f32.mrf.mxu0
    %v84 = vpop.f32.mrf.mxu0
    %v85 = vpop.f32.mrf.mxu0
    %86 = vdwg.mxu0
    %vm87 = vcmask 138240
    %v88 = vsel %vm87, %v82, -inf
    %89 = vmax.xlane.f32.xlu0 %v88
    %v90 = vpop.xlane.xlu0 %89
    %v91 = vsub.f32 %v82, %v90
    %v92 = vmul.f32 %v91, 1.442695
    %v93 = vpow.pop %v92
    %v94 = vld [vmem:[%s0] sm:$0xff]
    %v95 = vmul.f32 %v94, 16.0
    %v96 = vceil.f32 %v95
    %v97 = vsub.f32 %v96, %v95
    %v98 = vsub.f32 1.0, %v97
    %v99 = vsub.f32 %v96, 1.0
    %vm100 = vcmp.lt.f32.partialorder %v99, 0.0
    %v101 = vadd.f32 %v99, 1.0
    %v102 = vsel %vm100, %v101, %v99
    %v103 = vmax.f32 %v102, 0.0
    %v104 = vmin.f32 %v103, 16.0
    %v105 = vcvt.f32.s32.to.zero.pseudo %v104
    %v106 = vmax.f32 %v96, 0.0
    %v107 = vmin.f32 %v106, 16.0
    %v108 = vcvt.f32.s32.to.zero.pseudo %v107
    %v109 = vlaneseq
    %v110 = vand.u32 %v109, 127
    %111 = vset.pattern.permute.xlu0 0
    %112 = vperm.xlu0 %111, %v105
    %v113 = vpop.permute.xlu0 %112
    %vm114 = vcmp.eq.s32.totalorder %v110, %v113
    %v115 = vsub.f32 1.0, %v98
    %117 = vset.pattern.permute.xlu0 0
    %118 = vperm.xlu0 %117, %v115
    %v119 = vpop.permute.xlu0 %118
    %v121 = vsel %vm114, %v119, 0.0
    %122 = vset.pattern.permute.xlu0 0
    %123 = vperm.xlu0 %122, %v108
    %v124 = vpop.permute.xlu0 %123
    %vm125 = vcmp.eq.s32.totalorder %v110, %v124
    %127 = vset.pattern.permute.xlu0 0
    %128 = vperm.xlu0 %127, %v98
    %v129 = vpop.permute.xlu0 %128
    %v131 = vsel %vm125, %v129, 0.0
    %v132 = vadd.f32 %v121, %v131
    %v133 = vmul.f32 %v93, %v132
    %v135 = vsel %vm87, 1.0, 0
    %v138 = vsel %vm87, %v133, 0
    %140 = vmatprep.subr.mxu0 0.0
    %141 = vmatpush1.xpose.msra.mxu0 0.0
    %142 = vmatprep.subr.mxu0 0.0
    %143 = vmatpush1.xpose.msra.mxu0 0.0
    %144 = vmatprep.subr.mxu0 0.0
    %145 = vmatpush1.xpose.msra.mxu0 0.0
    %146 = vmatprep.subr.mxu0 0.0
    %147 = vmatpush1.xpose.msra.mxu0 0.0
    %148 = vmatprep.subr.mxu0 0.0
    %149 = vmatpush1.xpose.msra.mxu0 0.0
    %150 = vmatprep.subr.mxu0 0.0
    %151 = vmatpush1.xpose.msra.mxu0 0.0
    %152 = vmatprep.subr.mxu0 0.0
    %153 = vmatpush1.xpose.msra.mxu0 0.0
    %154 = vmatprep.subr.mxu0 0.0
    %155 = vmatpush1.xpose.msra.mxu0 0.0
    %156 = vmatprep.subr.mxu0 0.0
    %157 = vmatpush1.xpose.msra.mxu0 0.0
    %158 = vmatprep.subr.mxu0 0.0
    %159 = vmatpush1.xpose.msra.mxu0 0.0
    %160 = vmatprep.subr.mxu0 0.0
    %161 = vmatpush1.xpose.msra.mxu0 0.0
    %162 = vmatprep.subr.mxu0 0.0
    %163 = vmatpush1.xpose.msra.mxu0 0.0
    %164 = vmatprep.subr.mxu0 0.0
    %165 = vmatpush1.xpose.msra.mxu0 0.0
    %166 = vmatprep.subr.mxu0 0.0
    %167 = vmatpush1.xpose.msra.mxu0 0.0
    %168 = vmatprep.subr.mxu0 0.0
    %169 = vmatpush1.xpose.msra.mxu0 0.0
    %170 = vmatprep.subr.mxu0 0.0
    %171 = vmatpush1.xpose.msra.mxu0 %v138
    %172 = vmatprep.subr.mxu0 0.0
    %173 = vmatpush2.xpose.msra.mxu0 0.0
    %174 = vmatprep.subr.mxu0 0.0
    %175 = vmatpush2.xpose.msra.mxu0 0.0
    %176 = vmatprep.subr.mxu0 0.0
    %177 = vmatpush2.xpose.msra.mxu0 0.0
    %178 = vmatprep.subr.mxu0 0.0
    %179 = vmatpush2.xpose.msra.mxu0 0.0
    %180 = vmatprep.subr.mxu0 0.0
    %181 = vmatpush2.xpose.msra.mxu0 0.0
    %182 = vmatprep.subr.mxu0 0.0
    %183 = vmatpush2.xpose.msra.mxu0 0.0
    %184 = vmatprep.subr.mxu0 0.0
    %185 = vmatpush2.xpose.msra.mxu0 0.0
    %186 = vmatprep.subr.mxu0 0.0
    %187 = vmatpush2.xpose.msra.mxu0 0.0
    %188 = vmatprep.subr.mxu0 0.0
    %189 = vmatpush2.xpose.msra.mxu0 0.0
    %190 = vmatprep.subr.mxu0 0.0
    %191 = vmatpush2.xpose.msra.mxu0 0.0
    %192 = vmatprep.subr.mxu0 0.0
    %193 = vmatpush2.xpose.msra.mxu0 0.0
    %194 = vmatprep.subr.mxu0 0.0
    %195 = vmatpush2.xpose.msra.mxu0 0.0
    %196 = vmatprep.subr.mxu0 0.0
    %197 = vmatpush2.xpose.msra.mxu0 0.0
    %198 = vmatprep.subr.mxu0 0.0
    %199 = vmatpush2.xpose.msra.mxu0 0.0
    %200 = vmatprep.subr.mxu0 0.0
    %201 = vmatpush2.xpose.msra.mxu0 0.0
    %202 = vmatprep.subr.mxu0 0.0
    %203 = vmatpush2.xpose.msra.mxu0 0.0
    %204 = vmatprep.mubr.f32.mxu0 0.0
    %205 = vmatmul.mubr.f32.gmra.mxu0 %v135
    %v206 = vpop.f32.mrf.mxu0
    %v207 = vadd.f32 0.0, %v206
    %v208 = vpop.f32.mrf.mxu0
    %209 = vdwg.mxu0
    %v211 = vsel %vm87, %v93, 0
    %213 = vmatprep.subr.mxu0 0.0
    %214 = vmatpush1.xpose.msra.mxu0 0.0
    %215 = vmatprep.subr.mxu0 0.0
    %216 = vmatpush1.xpose.msra.mxu0 0.0
    %217 = vmatprep.subr.mxu0 0.0
    %218 = vmatpush1.xpose.msra.mxu0 0.0
    %219 = vmatprep.subr.mxu0 0.0
    %220 = vmatpush1.xpose.msra.mxu0 0.0
    %221 = vmatprep.subr.mxu0 0.0
    %222 = vmatpush1.xpose.msra.mxu0 0.0
    %223 = vmatprep.subr.mxu0 0.0
    %224 = vmatpush1.xpose.msra.mxu0 0.0
    %225 = vmatprep.subr.mxu0 0.0
    %226 = vmatpush1.xpose.msra.mxu0 0.0
    %227 = vmatprep.subr.mxu0 0.0
    %228 = vmatpush1.xpose.msra.mxu0 0.0
    %229 = vmatprep.subr.mxu0 0.0
    %230 = vmatpush1.xpose.msra.mxu0 0.0
    %231 = vmatprep.subr.mxu0 0.0
    %232 = vmatpush1.xpose.msra.mxu0 0.0
    %233 = vmatprep.subr.mxu0 0.0
    %234 = vmatpush1.xpose.msra.mxu0 0.0
    %235 = vmatprep.subr.mxu0 0.0
    %236 = vmatpush1.xpose.msra.mxu0 0.0
    %237 = vmatprep.subr.mxu0 0.0
    %238 = vmatpush1.xpose.msra.mxu0 0.0
    %239 = vmatprep.subr.mxu0 0.0
    %240 = vmatpush1.xpose.msra.mxu0 0.0
    %241 = vmatprep.subr.mxu0 0.0
    %242 = vmatpush1.xpose.msra.mxu0 0.0
    %243 = vmatprep.subr.mxu0 0.0
    %244 = vmatpush1.xpose.msra.mxu0 %v211
    %245 = vmatprep.subr.mxu0 0.0
    %246 = vmatpush2.xpose.msra.mxu0 0.0
    %247 = vmatprep.subr.mxu0 0.0
    %248 = vmatpush2.xpose.msra.mxu0 0.0
    %249 = vmatprep.subr.mxu0 0.0
    %250 = vmatpush2.xpose.msra.mxu0 0.0
    %251 = vmatprep.subr.mxu0 0.0
    %252 = vmatpush2.xpose.msra.mxu0 0.0
    %253 = vmatprep.subr.mxu0 0.0
    %254 = vmatpush2.xpose.msra.mxu0 0.0
    %255 = vmatprep.subr.mxu0 0.0
    %256 = vmatpush2.xpose.msra.mxu0 0.0
    %257 = vmatprep.subr.mxu0 0.0
    %258 = vmatpush2.xpose.msra.mxu0 0.0
    %259 = vmatprep.subr.mxu0 0.0
    %260 = vmatpush2.xpose.msra.mxu0 0.0
    %261 = vmatprep.subr.mxu0 0.0
    %262 = vmatpush2.xpose.msra.mxu0 0.0
    %263 = vmatprep.subr.mxu0 0.0
    %264 = vmatpush2.xpose.msra.mxu0 0.0
    %265 = vmatprep.subr.mxu0 0.0
    %266 = vmatpush2.xpose.msra.mxu0 0.0
    %267 = vmatprep.subr.mxu0 0.0
    %268 = vmatpush2.xpose.msra.mxu0 0.0
    %269 = vmatprep.subr.mxu0 0.0
    %270 = vmatpush2.xpose.msra.mxu0 0.0
    %271 = vmatprep.subr.mxu0 0.0
    %272 = vmatpush2.xpose.msra.mxu0 0.0
    %273 = vmatprep.subr.mxu0 0.0
    %274 = vmatpush2.xpose.msra.mxu0 0.0
    %275 = vmatprep.subr.mxu0 0.0
    %276 = vmatpush2.xpose.msra.mxu0 0.0
    %277 = vmatprep.mubr.f32.mxu0 0.0
    %278 = vmatmul.mubr.f32.gmra.mxu0 %v135
    %v279 = vpop.f32.mrf.mxu0
    %v280 = vadd.f32 0.0, %v279
    %v281 = vpop.f32.mrf.mxu0
    %282 = vdwg.mxu0
    %v283 = vrcp.pop %v280
    %v284 = vmul.f32 %v207, %v283
    %vm285 = vcmask 57344
    %286 = vst.msk [vmem:[#allocation2] sm:$0x1] %vm285, %v284
    // Predicated region
    $region18: #{tpu_custom_call.1} parent=1 // pred_check
      _
    $region19: #{tpu_custom_call.1} parent=1 // pred_check_branch
      %288 = sbr.rel (0) target = $region21
    $region20: #{tpu_custom_call.1} parent=1 // pred_region
      %s290 = ssub.s32 16, 16
      %291 = vsyncadd [#allocation3], %s290
      %s293 = sshll.u32 [#allocation2], 4
      %s294 = int_to_ptr.vmem [resolvable:$true] %s293
      %296 = dma.vmem_to_hbm [thread:$0]  %s294, 16, %s4, [#allocation3]
    $region21: #{tpu_custom_call.1} parent=1 // pred_fallthru
      _
    // Predicated region
    $region22: #{tpu_custom_call.1} parent=1 // pred_check
      _
    $region23: #{tpu_custom_call.1} parent=1 // pred_check_branch
      %298 = sbr.rel (0) target = $region25
    $region24: #{tpu_custom_call.1} parent=1 // pred_region
      %299 = dma.done [#allocation3], 16
    $region25: #{tpu_custom_call.1} parent=1 // pred_fallthru
      _
    %300 = vsyncpa [#allocation3], 1

</llo_original>
